<compile_context>
chip_gen: v7x
topology: tpu7x:2x2x1
jax: 0.10.0
libtpu: 0.0.40
codegen_flags: <defaults>
</compile_context>

<pallas_src>
import functools

import jax
import jax.numpy as jnp
from jax import lax
from jax.experimental import pallas as pl
from jax.experimental.pallas import tpu as pltpu

T = 1.0  # temperature from LogitNormLoss(t=1.0)

_LANE = 128
_SUBLANE = 8
_VMEM_LIMIT_BYTES = 48 * 1024 * 1024   # <= v7x 64 MiB physical; fine on v5e/v6e
_TILE_VMEM_BUDGET = 24 * 1024 * 1024   # per-grid-step working-set target


def _logitnorm_tile_kernel(x_ref, tgt_ref, out_ref, *, n_total, tile_rows, t,
                           subtract_max):
    # x_ref: (TN, C) logits, tgt_ref: (TN, 1) int32 targets,
    # out_ref: (8, 128) f32 lane-dense block holding the tile's partial sum
    # at [0, 0] and exact zeros elsewhere.
    x = x_ref[...]
    if x.dtype != jnp.float32:
        x = x.astype(jnp.float32)                             # keep f32 math
    tgt = tgt_ref[...]                                        # (TN, 1) int32

    # logit normalization: x / (||x||_2 + 1e-7) / t, with both divides folded
    # into one per-row reciprocal (exact) + one per-element multiply.
    norms = jnp.sqrt(jnp.sum(x * x, axis=-1, keepdims=True)) + 1e-7
    inv = 1.0 / (norms * t)                                   # (TN, 1)
    logits = x * inv                                          # |logits| <= 1/t

    if subtract_max:
        # Only taken when t is small enough that exp(1/t) could overflow f32.
        m = jnp.max(logits, axis=-1, keepdims=True)
        lse = jnp.log(jnp.sum(jnp.exp(logits - m), axis=-1, keepdims=True)) + m
    else:
        # Max-free LSE: logits bounded by 1/t after normalization, no overflow.
        lse = jnp.log(jnp.sum(jnp.exp(logits), axis=-1, keepdims=True))

    # Target gather via compare + select feeding a row reduction (XLU).
    col_ids = lax.broadcasted_iota(jnp.int32, logits.shape, 1)
    tgt_logit = jnp.sum(jnp.where(col_ids == tgt, logits, 0.0),
                        axis=-1, keepdims=True)               # (TN, 1)

    losses = lse - tgt_logit                                  # (TN, 1)

    if n_total % tile_rows != 0:
        # Ragged last tile: rows past the true N hold unspecified data; force
        # their loss to exactly 0 via select (not multiply) so NaNs don't leak.
        row0 = pl.program_id(0) * tile_rows
        row_ids = row0 + lax.broadcasted_iota(jnp.int32, losses.shape, 0)
        losses = jnp.where(row_ids < n_total, losses, 0.0)

    tile_sum = jnp.sum(losses)                                # scalar f32

    # Lane-dense (8, 128) output block: partial sum at [0, 0], zeros elsewhere,
    # so the store is a single unmasked vst per tile.
    r = lax.broadcasted_iota(jnp.int32, (_SUBLANE, _LANE), 0)
    c = lax.broadcasted_iota(jnp.int32, (_SUBLANE, _LANE), 1)
    out_ref[...] = jnp.where((r == 0) & (c == 0), tile_sum, 0.0)


def _choose_tile_rows(n, c, itemsize):
    """Rows per tile from a VMEM byte budget that accounts for the in-kernel
    temporaries, not just the double-buffered input block.

    Per grid step (lane dim padded to 128 inside VMEM):
        2 * TN * c_pad * itemsize    double-buffered x block
      + ~5 * TN * c_pad * 4          f32/int32 (TN, C) temporaries
    The (TN, 1) per-row temps and the (8, 128) output block are negligible."""
    c_pad = -(-c // _LANE) * _LANE
    per_row = c_pad * (2 * itemsize + 5 * 4)
    tn = _TILE_VMEM_BUDGET // max(1, per_row)
    tn = max(_SUBLANE, (int(tn) // _SUBLANE) * _SUBLANE)      # sublane-aligned
    if n <= tn:
        return n                                   # single tile == full array
    # Keep >=4 tiles so the "parallel" row axis can shard across both v7x
    # TensorCores with >=2 tiles per core (no-op on single-TC v5e/v6e).
    quarter = ((n + 3) // 4 + _SUBLANE - 1) // _SUBLANE * _SUBLANE
    return min(tn, max(_SUBLANE, quarter))


def logitnorm_loss(x, target, t=T, tile_rows=None):
    """x: (N, C) float (kept in its native dtype), target: (N,) int.
    Returns scalar mean LogitNorm cross-entropy loss (f32)."""
    n, c = x.shape
    tgt2d = target.astype(jnp.int32).reshape(n, 1)

    if tile_rows is None:
        tn = _choose_tile_rows(n, c, jnp.dtype(x.dtype).itemsize)
    else:
        tn = int(tile_rows)
        if n > tn:
            # Keep the (8, 128) BlockSpec rule: sublane block dim must be a
            # multiple of 8 whenever it is not the full array dim.
            tn = max(_SUBLANE, (tn // _SUBLANE) * _SUBLANE)
        else:
            tn = n
    num_tiles = pl.cdiv(n, tn)

    # Max-free LSE is only safe while exp(1/t) stays finite in f32.
    subtract_max = float(t) < (1.0 / 64.0)

    kernel = functools.partial(
        _logitnorm_tile_kernel, n_total=n, tile_rows=tn, t=float(t),
        subtract_max=subtract_max)

    partials = pl.pallas_call(
        kernel,
        out_shape=jax.ShapeDtypeStruct((num_tiles * _SUBLANE, _LANE),
                                       jnp.float32),
        grid=(num_tiles,),
        in_specs=[
            pl.BlockSpec((tn, c), lambda i: (i, 0)),   # full class dim / tile
            pl.BlockSpec((tn, 1), lambda i: (i, 0)),
        ],
        out_specs=pl.BlockSpec((_SUBLANE, _LANE), lambda i: (i, 0)),
        compiler_params=pltpu.CompilerParams(
            dimension_semantics=("parallel",),         # megacore / 2-TC shard
            vmem_limit_bytes=_VMEM_LIMIT_BYTES),
    )(x, tgt2d)

    # 'mean' reduction over the GLOBAL N. Padded rows and every non-[0, 0]
    # lane of each tile block were written as exact 0, so summing the whole
    # (num_tiles*8, 128) output is exact and tiny.
    return jnp.sum(partials) / jnp.float32(n)


def _reference(x, target, t=T):
    x = x.astype(jnp.float32)
    norms = jnp.sqrt(jnp.sum(x * x, axis=-1, keepdims=True)) + 1e-7
    logits = (x / norms) / t
    logp = jax.nn.log_softmax(logits, axis=-1)
    nll = -jnp.take_along_axis(logp, target[:, None].astype(jnp.int32), axis=-1)
    return jnp.mean(nll)


if __name__ == "__main__":
    key = jax.random.PRNGKey(0)

    # Small case consistent with a classification loss: batch=8, classes=32.
    kx, kt, key = jax.random.split(key, 3)
    N, C = 8, 32
    x = jax.random.normal(kx, (N, C), dtype=jnp.float32)
    target = jax.random.randint(kt, (N,), 0, C, dtype=jnp.int32)

    loss = logitnorm_loss(x, target)
    jax.block_until_ready(loss)
    ref = _reference(x, target)
    assert jnp.allclose(loss, ref, atol=1e-5, rtol=1e-5), (loss, ref)

    # Second case exercising the tiled grid + ragged-last-tile mask path.
    kx2, kt2 = jax.random.split(key)
    N2, C2 = 20, 32
    x2 = jax.random.normal(kx2, (N2, C2), dtype=jnp.float32)
    target2 = jax.random.randint(kt2, (N2,), 0, C2, dtype=jnp.int32)

    loss2 = logitnorm_loss(x2, target2, tile_rows=8)   # grid=(3,), ragged tail
    jax.block_until_ready(loss2)
    ref2 = _reference(x2, target2)
    assert jnp.allclose(loss2, ref2, atol=1e-5, rtol=1e-5), (loss2, ref2)

    print("KERNEL_OK")
</pallas_src>

<mosaic_0001>
module attributes {stable_mosaic.version = 11 : i64} {
  func.func @_logitnorm_tile_kernel(%arg0: i32, %arg1: memref<8x32xf32, #tpu.memory_space<vmem>>, %arg2: memref<8x1xi32, #tpu.memory_space<vmem>>, %arg3: memref<8x128xf32, #tpu.memory_space<vmem>>) attributes {dimension_semantics = [#tpu.dimension_semantics<parallel>], iteration_bounds = array<i64: 1>, scalar_prefetch = 0 : i64, scratch_operands = 0 : i64, tpu.core_type = #tpu.core_type<tc>, window_params = [{transform_indices = @transform_0, window_bounds = array<i64: 8, 32>}, {transform_indices = @transform_1, window_bounds = array<i64: 8, 1>}, {transform_indices = @transform_2, window_bounds = array<i64: 8, 128>}]} {
    %c0 = arith.constant 0 : index
    %c0_0 = arith.constant 0 : index
    %0 = vector.load %arg1[%c0, %c0_0] : memref<8x32xf32, #tpu.memory_space<vmem>>, vector<8x32xf32>
    %c0_1 = arith.constant 0 : index
    %c0_2 = arith.constant 0 : index
    %1 = vector.load %arg2[%c0_1, %c0_2] : memref<8x1xi32, #tpu.memory_space<vmem>>, vector<8x1xi32>
    %2 = arith.mulf %0, %0 : vector<8x32xf32>
    %cst = arith.constant dense<0.000000e+00> : vector<8xf32>
    %3 = vector.multi_reduction <add>, %2, %cst [1] : vector<8x32xf32> to vector<8xf32>
    %4 = vector.shape_cast %3 : vector<8xf32> to vector<8x1xf32>
    %5 = math.sqrt %4 : vector<8x1xf32>
    %cst_3 = arith.constant 1.000000e-07 : f32
    %6 = vector.broadcast %cst_3 : f32 to vector<8x1xf32>
    %7 = arith.addf %5, %6 : vector<8x1xf32>
    %cst_4 = arith.constant 1.000000e+00 : f32
    %8 = vector.broadcast %cst_4 : f32 to vector<8x1xf32>
    %9 = arith.mulf %7, %8 : vector<8x1xf32>
    %cst_5 = arith.constant 1.000000e+00 : f32
    %10 = vector.broadcast %cst_5 : f32 to vector<8x1xf32>
    %11 = arith.divf %10, %9 : vector<8x1xf32>
    %12 = vector.broadcast %11 : vector<8x1xf32> to vector<8x32xf32>
    %13 = arith.mulf %0, %12 : vector<8x32xf32>
    %14 = math.exp %13 : vector<8x32xf32>
    %cst_6 = arith.constant dense<0.000000e+00> : vector<8xf32>
    %15 = vector.multi_reduction <add>, %14, %cst_6 [1] : vector<8x32xf32> to vector<8xf32>
    %16 = vector.shape_cast %15 : vector<8xf32> to vector<8x1xf32>
    %17 = math.log %16 : vector<8x1xf32>
    %18 = tpu.iota {dimensions = array<i32: 1>} : vector<8x32xi32>
    %19 = vector.broadcast %1 : vector<8x1xi32> to vector<8x32xi32>
    %20 = arith.cmpi eq, %18, %19 : vector<8x32xi32>
    %cst_7 = arith.constant 0.000000e+00 : f32
    %21 = vector.broadcast %cst_7 : f32 to vector<8x32xf32>
    %22 = arith.select %20, %13, %21 : vector<8x32xi1>, vector<8x32xf32>
    %cst_8 = arith.constant dense<0.000000e+00> : vector<8xf32>
    %23 = vector.multi_reduction <add>, %22, %cst_8 [1] : vector<8x32xf32> to vector<8xf32>
    %24 = vector.shape_cast %23 : vector<8xf32> to vector<8x1xf32>
    %25 = arith.subf %17, %24 : vector<8x1xf32>
    %26 = vector.shape_cast %25 : vector<8x1xf32> to vector<1x8x1xf32>
    %cst_9 = arith.constant dense<0.000000e+00> : vector<1xf32>
    %27 = vector.multi_reduction <add>, %26, %cst_9 [1, 2] : vector<1x8x1xf32> to vector<1xf32>
    %28 = vector.shape_cast %27 : vector<1xf32> to vector<1x1x1xf32>
    %29 = vector.extract %28[0, 0, 0] : f32 from vector<1x1x1xf32>
    %30 = tpu.iota {dimensions = array<i32: 0>} : vector<8x128xi32>
    %31 = tpu.iota {dimensions = array<i32: 1>} : vector<8x128xi32>
    %c0_i32 = arith.constant 0 : i32
    %32 = vector.broadcast %c0_i32 : i32 to vector<8x128xi32>
    %33 = arith.cmpi eq, %30, %32 : vector<8x128xi32>
    %c0_i32_10 = arith.constant 0 : i32
    %34 = vector.broadcast %c0_i32_10 : i32 to vector<8x128xi32>
    %35 = arith.cmpi eq, %31, %34 : vector<8x128xi32>
    %36 = arith.andi %33, %35 : vector<8x128xi1>
    %cst_11 = arith.constant 0.000000e+00 : f32
    %37 = vector.broadcast %29 : f32 to vector<8x128xf32>
    %38 = vector.broadcast %cst_11 : f32 to vector<8x128xf32>
    %39 = arith.select %36, %37, %38 : vector<8x128xi1>, vector<8x128xf32>
    %c0_12 = arith.constant 0 : index
    %c0_13 = arith.constant 0 : index
    %40 = vector.load %arg3[%c0_12, %c0_13] : memref<8x128xf32, #tpu.memory_space<vmem>>, vector<8x128xf32>
    tpu.vector_store %arg3[%c0_12, %c0_13], %39 {strides = array<i32>} : memref<8x128xf32, #tpu.memory_space<vmem>>, vector<8x128xf32>,
    return
  }
  func.func @transform_0(%arg0: i32) -> (i32, i32) {
    %c0_i32 = arith.constant 0 : i32
    %c0_i32_0 = arith.constant 0 : i32
    return %arg0, %c0_i32 : i32, i32
  }
  func.func @transform_1(%arg0: i32) -> (i32, i32) {
    %c0_i32 = arith.constant 0 : i32
    %c0_i32_0 = arith.constant 0 : i32
    return %arg0, %c0_i32 : i32, i32
  }
  func.func @transform_2(%arg0: i32) -> (i32, i32) {
    %c0_i32 = arith.constant 0 : i32
    %c0_i32_0 = arith.constant 0 : i32
    return %arg0, %c0_i32 : i32, i32
  }
}

</mosaic_0001>

<llo_original>
// kernel: tpu_custom_call.1
$region0: #{tpu_custom_call.1}
  #allocation0 [shape = 'u32[]', space=smem, size = 0x4, offset = 0x4, fixed_abs, tag = 'smem constant byte address 0x4 - core index']
  #allocation1 [shape = 'u32[144,128]{1,0:T(1,128)}', space=vmem, size = 0x12000, scoped, tag = 'internal scratch']
  %s0 = inlined_call_operand.vmem [shape: f32[8,32], index: 0, kind: input, shape index: {}]
  %s1 = inlined_call_operand.vmem [shape: s32[8,1], index: 1, kind: input, shape index: {}]
  %s2 = inlined_call_operand.hbm [shape: f32[8,128], index: 2, kind: output, shape index: {}]
  %s3 = sld [smem:[#allocation0]]
  $region18: #{tpu_custom_call.1} parent=0
    _
  %s5 = ssub.s32 1, %s3
  %s6 = scalar_select 0, %s5, %s3
  $region1: #{tpu_custom_call.1} parent=0
    #allocation2 [shape = 'u8[4096]{0}', space=vmem, size = 0x1000, scoped, tag = 'output window, operand 0, single buffered']
    #allocation3 [shape = 's32[1]{0}', space=sflag, size = 0x4, scoped, tag = 'scoped memory for tpu_custom_call.1']
    %7 = vsyncpa [#allocation3], 0
    // Predicated region
    $region2: #{tpu_custom_call.1} parent=1 // pred_check
      _
    $region3: #{tpu_custom_call.1} parent=1 // pred_check_branch
      %9 = sbr.rel (0) target = $region5
    $region4: #{tpu_custom_call.1} parent=1 // pred_region
      _
    $region5: #{tpu_custom_call.1} parent=1 // pred_fallthru
      _
    // Predicated region
    $region6: #{tpu_custom_call.1} parent=1 // pred_check
      _
    $region7: #{tpu_custom_call.1} parent=1 // pred_check_branch
      %11 = sbr.rel (0) target = $region9
    $region8: #{tpu_custom_call.1} parent=1 // pred_region
      _
    $region9: #{tpu_custom_call.1} parent=1 // pred_fallthru
      _
    %v12 = vld [vmem:[%s0] sm:$0xff]
    %v13 = vld [vmem:[%s1] sm:$0xff]
    %v14 = vmul.f32 %v12, %v12
    %vm15 = vcmask 261120
    %v16 = vsel %vm15, %v14, 0.0
    %17 = vadd.xlane.f32.xlu0 %v16
    %v18 = vpop.xlane.xlu0 %17
    %v19 = vrsqrt.pop %v18
    %v20 = vmul.f32 %v18, %v19
    %vm21 = vcmp.eq.f32.partialorder %v18, inf
    %v22 = vsel %vm21, %v18, %v20
    %vm23 = vcmp.eq.f32.partialorder %v18, 0.0
    %v24 = vand.u32 %v18, 2147483648
    %v25 = vsel %vm23, %v24, %v22
    %v26 = vadd.f32 %v25, 1e-07
    %v27 = vrcp.pop %v26
    %v28 = vmul.f32 1.0, %v27
    %v29 = vmul.f32 %v12, %v28
    %v30 = vmul.f32 %v29, 1.442695
    %v31 = vpow.pop %v30
    %v32 = vsel %vm15, %v31, 0.0
    %33 = vadd.xlane.f32.xlu0 %v32
    %v34 = vpop.xlane.xlu0 %33
    %v35 = vlog2.pop %v34
    %v36 = vmul.f32 %v35, 0.6931472
    %v37 = vlaneseq
    %v38 = vand.u32 %v37, 127
    %39 = vset.pattern.permute.xlu0 0
    %40 = vperm.xlu0 %39, %v13
    %v41 = vpop.permute.xlu0 %40
    %vm42 = vcmp.eq.s32.totalorder %v38, %v41
    %v43 = vsel %vm42, %v29, 0.0
    %v44 = vsel %vm15, %v43, 0.0
    %45 = vadd.xlane.f32.xlu0 %v44
    %v46 = vpop.xlane.xlu0 %45
    %v47 = vsub.f32 %v36, %v46
    %vm48 = vcmask 7168
    %v49 = vsel %vm48, %v47, 0.0
    %50 = vadd.xlane.f32.xlu0 %v49
    %v51 = vpop.xlane.xlu0 %50
    %v52 = vrot.slane %v51, 4
    %v53 = vadd.f32 %v51, %v52
    %v54 = vrot.slane %v53, 2
    %v55 = vadd.f32 %v53, %v54
    %v56 = vrot.slane %v55, 1
    %v57 = vadd.f32 %v55, %v56
    %s58 = vtos %v57
    %v59 = vlaneseq
    %v60 = vshrl.u32 %v59, 7
    %vm61 = vcmp.eq.s32.totalorder %v60, 0
    %vm62 = vcmp.eq.s32.totalorder %v38, 0
    %vm63 = vmand %vm61, %vm62
    %v64 = vstv %s58
    %v65 = vsel %vm63, %v64, 0.0
    %66 = vst [vmem:[#allocation2] sm:$0xff] %v65
    // Predicated region
    $region10: #{tpu_custom_call.1} parent=1 // pred_check
      _
    $region11: #{tpu_custom_call.1} parent=1 // pred_check_branch
      %68 = sbr.rel (0) target = $region13
    $region12: #{tpu_custom_call.1} parent=1 // pred_region
      %s70 = ssub.s32 128, 128
      %71 = vsyncadd [#allocation3], %s70
      %s73 = sshll.u32 [#allocation2], 4
      %s74 = int_to_ptr.vmem [resolvable:$true] %s73
      %76 = dma.vmem_to_hbm [thread:$0]  %s74, 128, %s2, [#allocation3]
    $region13: #{tpu_custom_call.1} parent=1 // pred_fallthru
      _
    // Predicated region
    $region14: #{tpu_custom_call.1} parent=1 // pred_check
      _
    $region15: #{tpu_custom_call.1} parent=1 // pred_check_branch
      %78 = sbr.rel (0) target = $region17
    $region16: #{tpu_custom_call.1} parent=1 // pred_region
      %79 = dma.done [#allocation3], 128
    $region17: #{tpu_custom_call.1} parent=1 // pred_fallthru
      _
    %80 = vsyncpa [#allocation3], 1

</llo_original>
